<compile_context>
chip_gen: v5e
topology: v5e:2x2
jax: 0.10.0
libtpu: 0.0.40
codegen_flags: <defaults>
</compile_context>

<pallas_src>
import jax
import jax.numpy as jnp
from jax.experimental import pallas as pl
from jax.experimental.pallas import tpu as pltpu

IN_DIM = 784
HID_DIM = 128
OUT_DIM = 10
OUT_PAD = 128  # lane-dense padded output width


def _round_up(x, m):
    return (x + m - 1) // m * m


def prepare_params(w1, w2):
    """One-time parameter prep (do NOT call per forward).

    w1: [128, 784] torch layout  ->  w1_t:  [784, 128]
    w2: [10, 128]  torch layout  ->  w2_pad:[128, 128] (cols 10..127 are zero)
    """
    w1_t = jnp.transpose(w1).astype(jnp.float32)            # [784, 128]
    w2_t = jnp.transpose(w2).astype(jnp.float32)             # [128, 10]
    w2_pad = jnp.zeros((HID_DIM, OUT_PAD), jnp.float32).at[:, :OUT_DIM].set(w2_t)
    return w1_t, w2_pad


def mlp_kernel(x_ref, w1_ref, w2_ref, o_ref):
    # x_ref:  [TB, 784]  w1_ref: [784, 128]  w2_ref: [128, 128]  o_ref: [TB, 128]
    h = jnp.dot(x_ref[...], w1_ref[...], preferred_element_type=jnp.float32)
    h = jnp.maximum(h, 0.0)  # ReLU
    o_ref[...] = jnp.dot(h, w2_ref[...], preferred_element_type=jnp.float32).astype(
        o_ref.dtype
    )


def mlp_forward(x, w1_t, w2_pad, *, tb=512):
    """x: [B, 784] f32; w1_t: [784, 128]; w2_pad: [128, 128] (from prepare_params)."""
    B = x.shape[0]

    # Batch tile: multiple of 8 (sublane), capped at `tb`; pad B up to a multiple.
    tb = min(tb, _round_up(B, 8))
    Bp = _round_up(B, tb)
    if Bp != B:
        x = jnp.pad(x, ((0, Bp - B), (0, 0)))

    grid = (Bp // tb,)

    cost = pl.CostEstimate(
        flops=2 * Bp * (IN_DIM * HID_DIM + HID_DIM * OUT_PAD),
        transcendentals=0,
        bytes_accessed=4 * (Bp * IN_DIM + IN_DIM * HID_DIM
                            + HID_DIM * OUT_PAD + Bp * OUT_PAD),
    )

    out_pad = pl.pallas_call(
        mlp_kernel,
        out_shape=jax.ShapeDtypeStruct((Bp, OUT_PAD), jnp.float32),
        grid_spec=pltpu.PrefetchScalarGridSpec(
            num_scalar_prefetch=0,
            grid=grid,
            in_specs=[
                pl.BlockSpec((tb, IN_DIM), lambda i: (i, 0)),       # x tile
                pl.BlockSpec((IN_DIM, HID_DIM), lambda i: (0, 0)),  # w1 resident
                pl.BlockSpec((HID_DIM, OUT_PAD), lambda i: (0, 0)), # w2 resident
            ],
            out_specs=pl.BlockSpec((tb, OUT_PAD), lambda i: (i, 0)),
        ),
        compiler_params=pltpu.CompilerParams(
            dimension_semantics=("parallel",),
        ),
        cost_estimate=cost,
    )(x, w1_t, w2_pad)

    return out_pad[:B, :OUT_DIM]


def reference_forward(x, w1, w2):
    h = jnp.maximum(x @ w1.T, 0.0)
    return h @ w2.T


if __name__ == "__main__":
    key = jax.random.PRNGKey(0)
    kx, k1, k2 = jax.random.split(key, 3)

    B = 8  # small batch
    # Deterministic parameter init mirroring nn.Linear default:
    # U(-1/sqrt(fan_in), 1/sqrt(fan_in))
    bound1 = 1.0 / (IN_DIM ** 0.5)
    bound2 = 1.0 / (HID_DIM ** 0.5)
    w1 = jax.random.uniform(k1, (HID_DIM, IN_DIM), jnp.float32, -bound1, bound1)
    w2 = jax.random.uniform(k2, (OUT_DIM, HID_DIM), jnp.float32, -bound2, bound2)
    x = jax.random.normal(kx, (B, IN_DIM), jnp.float32)

    # One-time param prep (hoisted out of the forward path).
    w1_t, w2_pad = prepare_params(w1, w2)

    out = mlp_forward(x, w1_t, w2_pad)
    out = jax.block_until_ready(out)

    ref = reference_forward(x, w1, w2)
    assert out.shape == (B, OUT_DIM)
    assert jnp.allclose(out, ref, atol=1e-4, rtol=1e-4)
    print("KERNEL_OK")
</pallas_src>

<mosaic_0001>
module attributes {stable_mosaic.version = 11 : i64} {
  func.func @mlp_kernel(%arg0: i32, %arg1: memref<8x784xf32, #tpu.memory_space<vmem>>, %arg2: memref<784x128xf32, #tpu.memory_space<vmem>>, %arg3: memref<128x128xf32, #tpu.memory_space<vmem>>, %arg4: memref<8x128xf32, #tpu.memory_space<vmem>>) attributes {dimension_semantics = [#tpu.dimension_semantics<parallel>], iteration_bounds = array<i64: 1>, scalar_prefetch = 0 : i64, scratch_operands = 0 : i64, tpu.core_type = #tpu.core_type<tc>, window_params = [{transform_indices = @transform_0, window_bounds = array<i64: 8, 784>}, {pipeline_mode = #tpu.pipeline_mode<synchronous>, transform_indices = @transform_1, window_bounds = array<i64: 784, 128>}, {pipeline_mode = #tpu.pipeline_mode<synchronous>, transform_indices = @transform_2, window_bounds = array<i64: 128, 128>}, {transform_indices = @transform_3, window_bounds = array<i64: 8, 128>}]} {
    %c0 = arith.constant 0 : index
    %c0_0 = arith.constant 0 : index
    %0 = vector.load %arg1[%c0, %c0_0] : memref<8x784xf32, #tpu.memory_space<vmem>>, vector<8x784xf32>
    %c0_1 = arith.constant 0 : index
    %c0_2 = arith.constant 0 : index
    %1 = vector.load %arg2[%c0_1, %c0_2] : memref<784x128xf32, #tpu.memory_space<vmem>>, vector<784x128xf32>
    %cst = arith.constant dense<0.000000e+00> : vector<8x128xf32>
    %2 = tpu.matmul %0, %1, %cst {dimension_numbers = #tpu.dot_dimension_numbers<[1], [0], [0], [1], [0, 0, 1, 1], [], []>} : vector<8x784xf32>, vector<784x128xf32>, vector<8x128xf32> -> vector<8x128xf32>
    %cst_3 = arith.constant 0.000000e+00 : f32
    %3 = vector.broadcast %cst_3 : f32 to vector<8x128xf32>
    %4 = arith.maximumf %2, %3 : vector<8x128xf32>
    %c0_4 = arith.constant 0 : index
    %c0_5 = arith.constant 0 : index
    %5 = vector.load %arg3[%c0_4, %c0_5] : memref<128x128xf32, #tpu.memory_space<vmem>>, vector<128x128xf32>
    %cst_6 = arith.constant dense<0.000000e+00> : vector<8x128xf32>
    %6 = tpu.matmul %4, %5, %cst_6 {dimension_numbers = #tpu.dot_dimension_numbers<[1], [0], [0], [1], [0, 0, 1, 1], [], []>} : vector<8x128xf32>, vector<128x128xf32>, vector<8x128xf32> -> vector<8x128xf32>
    %c0_7 = arith.constant 0 : index
    %c0_8 = arith.constant 0 : index
    %7 = vector.load %arg4[%c0_7, %c0_8] : memref<8x128xf32, #tpu.memory_space<vmem>>, vector<8x128xf32>
    tpu.vector_store %arg4[%c0_7, %c0_8], %6 {strides = array<i32>} : memref<8x128xf32, #tpu.memory_space<vmem>>, vector<8x128xf32>,
    return
  }
  func.func @transform_0(%arg0: i32) -> (i32, i32) {
    %c0_i32 = arith.constant 0 : i32
    %c0_i32_0 = arith.constant 0 : i32
    return %arg0, %c0_i32 : i32, i32
  }
  func.func @transform_1(%arg0: i32) -> (i32, i32) {
    %c0_i32 = arith.constant 0 : i32
    %c0_i32_0 = arith.constant 0 : i32
    %c0_i32_1 = arith.constant 0 : i32
    return %c0_i32, %c0_i32_0 : i32, i32
  }
  func.func @transform_2(%arg0: i32) -> (i32, i32) {
    %c0_i32 = arith.constant 0 : i32
    %c0_i32_0 = arith.constant 0 : i32
    %c0_i32_1 = arith.constant 0 : i32
    return %c0_i32, %c0_i32_0 : i32, i32
  }
  func.func @transform_3(%arg0: i32) -> (i32, i32) {
    %c0_i32 = arith.constant 0 : i32
    %c0_i32_0 = arith.constant 0 : i32
    return %arg0, %c0_i32 : i32, i32
  }
}

</mosaic_0001>

<llo_original>
// kernel: tpu_custom_call.1
$region0: #{tpu_custom_call.1}
  #allocation0 [shape = 'u32[]', space=smem, size = 0x4, offset = 0x4, fixed_abs, tag = 'smem constant byte address 0x4 - core index']
  #allocation1 [shape = 'u32[72,128]{1,0:T(1,128)}', space=vmem, size = 0x9000, scoped, tag = 'internal scratch']
  %s0 = inlined_call_operand.hbm [shape: f32[8,784], index: 0, kind: input, shape index: {}]
  %s1 = inlined_call_operand.hbm [shape: f32[784,128], index: 1, kind: input, shape index: {}]
  %s2 = inlined_call_operand.hbm [shape: f32[128,128], index: 2, kind: input, shape index: {}]
  %s3 = inlined_call_operand.hbm [shape: f32[8,128], index: 3, kind: output, shape index: {}]
  %s4 = sld [smem:[#allocation0]]
  $region34: #{tpu_custom_call.1} parent=0
    _
  %s6 = ssub.s32 1, %s4
  %s7 = scalar_select 0, %s6, %s4
  $region1: #{tpu_custom_call.1} parent=0
    #allocation2 [shape = 'u8[28672]{0}', space=vmem, size = 0x7000, scoped, tag = 'input window, operand 0, single buffered']
    #allocation3 [shape = 's32[1]{0}', space=sflag, size = 0x4, scoped, tag = 'scoped memory for tpu_custom_call.1']
    #allocation4 [shape = 's32[1]{0}', space=sflag, size = 0x4, scoped, tag = 'scoped memory for tpu_custom_call.1']
    #allocation5 [shape = 'u8[401408]{0}', space=vmem, size = 0x62000, scoped, tag = 'input window, operand 1, single buffered']
    #allocation6 [shape = 's32[1]{0}', space=sflag, size = 0x4, scoped, tag = 'scoped memory for tpu_custom_call.1']
    #allocation7 [shape = 'u8[65536]{0}', space=vmem, size = 0x10000, scoped, tag = 'input window, operand 2, single buffered']
    #allocation8 [shape = 'u8[4096]{0}', space=vmem, size = 0x1000, scoped, tag = 'output window, operand 0, single buffered']
    %8 = vsyncpa [#allocation3], 0
    %9 = vsyncpa [#allocation6], 0
    %10 = vsyncpa [#allocation4], 0
    // Predicated region
    $region2: #{tpu_custom_call.1} parent=1 // pred_check
      _
    $region3: #{tpu_custom_call.1} parent=1 // pred_check_branch
      %12 = sbr.rel (0) target = $region5
    $region4: #{tpu_custom_call.1} parent=1 // pred_region
      %14 = vsyncadd [#allocation3], 0
      %s16 = sshll.u32 %s0, 4
      %s17 = int_to_ptr.hbm [resolvable:$true] %s16
      %s18 = sshll.u32 [#allocation2], 4
      %s19 = int_to_ptr.vmem [resolvable:$true] %s18
      %21 = dma.hbm_to_vmem [thread:$0]  %s17, 896, %s19, [#allocation3]
    $region5: #{tpu_custom_call.1} parent=1 // pred_fallthru
      _
    // Predicated region
    $region6: #{tpu_custom_call.1} parent=1 // pred_check
      _
    $region7: #{tpu_custom_call.1} parent=1 // pred_check_branch
      %23 = sbr.rel (0) target = $region9
    $region8: #{tpu_custom_call.1} parent=1 // pred_region
      %25 = vsyncadd [#allocation6], 0
      %s26 = sshll.u32 %s1, 4
      %s27 = int_to_ptr.hbm [resolvable:$true] %s26
      %s28 = sshll.u32 [#allocation5], 4
      %s29 = int_to_ptr.vmem [resolvable:$true] %s28
      %34 = dma.hbm_to_vmem [thread:$0]  %s27, 12544, %s29, [#allocation6], 128, 128, 8
    $region9: #{tpu_custom_call.1} parent=1 // pred_fallthru
      _
    // Predicated region
    $region10: #{tpu_custom_call.1} parent=1 // pred_check
      _
    $region11: #{tpu_custom_call.1} parent=1 // pred_check_branch
      %36 = sbr.rel (0) target = $region13
    $region12: #{tpu_custom_call.1} parent=1 // pred_region
      %38 = vsyncadd [#allocation6], 0
      %s39 = sshll.u32 %s2, 4
      %s40 = int_to_ptr.hbm [resolvable:$true] %s39
      %s41 = sshll.u32 [#allocation7], 4
      %s42 = int_to_ptr.vmem [resolvable:$true] %s41
      %47 = dma.hbm_to_vmem [thread:$0]  %s40, 2048, %s42, [#allocation6], 128, 128, 8
    $region13: #{tpu_custom_call.1} parent=1 // pred_fallthru
      _
    // Predicated region
    $region14: #{tpu_custom_call.1} parent=1 // pred_check
      _
    $region15: #{tpu_custom_call.1} parent=1 // pred_check_branch
      %49 = sbr.rel (0) target = $region17
    $region16: #{tpu_custom_call.1} parent=1 // pred_region
      %51 = dma.done [#allocation3], 896
    $region17: #{tpu_custom_call.1} parent=1 // pred_fallthru
      _
    // Predicated region
    $region18: #{tpu_custom_call.1} parent=1 // pred_check
      _
    $region19: #{tpu_custom_call.1} parent=1 // pred_check_branch
      %53 = sbr.rel (0) target = $region21
    $region20: #{tpu_custom_call.1} parent=1 // pred_region
      %55 = dma.done [#allocation6], 12544
    $region21: #{tpu_custom_call.1} parent=1 // pred_fallthru
      _
    // Predicated region
    $region22: #{tpu_custom_call.1} parent=1 // pred_check
      _
    $region23: #{tpu_custom_call.1} parent=1 // pred_check_branch
      %57 = sbr.rel (0) target = $region25
    $region24: #{tpu_custom_call.1} parent=1 // pred_region
      %59 = dma.done [#allocation6], 2048
    $region25: #{tpu_custom_call.1} parent=1 // pred_fallthru
      _
    %v60 = vld [vmem:[#allocation2] sm:$0xff]
    %v61 = vld [vmem:[#allocation2 + $0x8] sm:$0xff]
    %v62 = vld [vmem:[#allocation2 + $0x10] sm:$0xff]
    %v63 = vld [vmem:[#allocation2 + $0x18] sm:$0xff]
    %v64 = vld [vmem:[#allocation2 + $0x20] sm:$0xff]
    %v65 = vld [vmem:[#allocation2 + $0x28] sm:$0xff]
    %v66 = vld [vmem:[#allocation2 + $0x30] sm:$0xff]
    %v67 = vld [vmem:[#allocation5] sm:$0xff]
    %v68 = vld [vmem:[#allocation5 + $0x8] sm:$0xff]
    %v69 = vld [vmem:[#allocation5 + $0x10] sm:$0xff]
    %v70 = vld [vmem:[#allocation5 + $0x18] sm:$0xff]
    %v71 = vld [vmem:[#allocation5 + $0x20] sm:$0xff]
    %v72 = vld [vmem:[#allocation5 + $0x28] sm:$0xff]
    %v73 = vld [vmem:[#allocation5 + $0x30] sm:$0xff]
    %v74 = vld [vmem:[#allocation5 + $0x38] sm:$0xff]
    %v75 = vld [vmem:[#allocation5 + $0x40] sm:$0xff]
    %v76 = vld [vmem:[#allocation5 + $0x48] sm:$0xff]
    %v77 = vld [vmem:[#allocation5 + $0x50] sm:$0xff]
    %v78 = vld [vmem:[#allocation5 + $0x58] sm:$0xff]
    %v79 = vld [vmem:[#allocation5 + $0x60] sm:$0xff]
    %v80 = vld [vmem:[#allocation5 + $0x68] sm:$0xff]
    %v81 = vld [vmem:[#allocation5 + $0x70] sm:$0xff]
    %v82 = vld [vmem:[#allocation5 + $0x78] sm:$0xff]
    %v83 = vld [vmem:[#allocation5 + $0x80] sm:$0xff]
    %v84 = vld [vmem:[#allocation5 + $0x88] sm:$0xff]
    %v85 = vld [vmem:[#allocation5 + $0x90] sm:$0xff]
    %v86 = vld [vmem:[#allocation5 + $0x98] sm:$0xff]
    %v87 = vld [vmem:[#allocation5 + $0xa0] sm:$0xff]
    %v88 = vld [vmem:[#allocation5 + $0xa8] sm:$0xff]
    %v89 = vld [vmem:[#allocation5 + $0xb0] sm:$0xff]
    %v90 = vld [vmem:[#allocation5 + $0xb8] sm:$0xff]
    %v91 = vld [vmem:[#allocation5 + $0xc0] sm:$0xff]
    %v92 = vld [vmem:[#allocation5 + $0xc8] sm:$0xff]
    %v93 = vld [vmem:[#allocation5 + $0xd0] sm:$0xff]
    %v94 = vld [vmem:[#allocation5 + $0xd8] sm:$0xff]
    %v95 = vld [vmem:[#allocation5 + $0xe0] sm:$0xff]
    %v96 = vld [vmem:[#allocation5 + $0xe8] sm:$0xff]
    %v97 = vld [vmem:[#allocation5 + $0xf0] sm:$0xff]
    %v98 = vld [vmem:[#allocation5 + $0xf8] sm:$0xff]
    %v99 = vld [vmem:[#allocation5 + $0x100] sm:$0xff]
    %v100 = vld [vmem:[#allocation5 + $0x108] sm:$0xff]
    %v101 = vld [vmem:[#allocation5 + $0x110] sm:$0xff]
    %v102 = vld [vmem:[#allocation5 + $0x118] sm:$0xff]
    %v103 = vld [vmem:[#allocation5 + $0x120] sm:$0xff]
    %v104 = vld [vmem:[#allocation5 + $0x128] sm:$0xff]
    %v105 = vld [vmem:[#allocation5 + $0x130] sm:$0xff]
    %v106 = vld [vmem:[#allocation5 + $0x138] sm:$0xff]
    %v107 = vld [vmem:[#allocation5 + $0x140] sm:$0xff]
    %v108 = vld [vmem:[#allocation5 + $0x148] sm:$0xff]
    %v109 = vld [vmem:[#allocation5 + $0x150] sm:$0xff]
    %v110 = vld [vmem:[#allocation5 + $0x158] sm:$0xff]
    %v111 = vld [vmem:[#allocation5 + $0x160] sm:$0xff]
    %v112 = vld [vmem:[#allocation5 + $0x168] sm:$0xff]
    %v113 = vld [vmem:[#allocation5 + $0x170] sm:$0xff]
    %v114 = vld [vmem:[#allocation5 + $0x178] sm:$0xff]
    %v115 = vld [vmem:[#allocation5 + $0x180] sm:$0xff]
    %v116 = vld [vmem:[#allocation5 + $0x188] sm:$0xff]
    %v117 = vld [vmem:[#allocation5 + $0x190] sm:$0xff]
    %v118 = vld [vmem:[#allocation5 + $0x198] sm:$0xff]
    %v119 = vld [vmem:[#allocation5 + $0x1a0] sm:$0xff]
    %v120 = vld [vmem:[#allocation5 + $0x1a8] sm:$0xff]
    %v121 = vld [vmem:[#allocation5 + $0x1b0] sm:$0xff]
    %v122 = vld [vmem:[#allocation5 + $0x1b8] sm:$0xff]
    %v123 = vld [vmem:[#allocation5 + $0x1c0] sm:$0xff]
    %v124 = vld [vmem:[#allocation5 + $0x1c8] sm:$0xff]
    %v125 = vld [vmem:[#allocation5 + $0x1d0] sm:$0xff]
    %v126 = vld [vmem:[#allocation5 + $0x1d8] sm:$0xff]
    %v127 = vld [vmem:[#allocation5 + $0x1e0] sm:$0xff]
    %v128 = vld [vmem:[#allocation5 + $0x1e8] sm:$0xff]
    %v129 = vld [vmem:[#allocation5 + $0x1f0] sm:$0xff]
    %v130 = vld [vmem:[#allocation5 + $0x1f8] sm:$0xff]
    %v131 = vld [vmem:[#allocation5 + $0x200] sm:$0xff]
    %v132 = vld [vmem:[#allocation5 + $0x208] sm:$0xff]
    %v133 = vld [vmem:[#allocation5 + $0x210] sm:$0xff]
    %v134 = vld [vmem:[#allocation5 + $0x218] sm:$0xff]
    %v135 = vld [vmem:[#allocation5 + $0x220] sm:$0xff]
    %v136 = vld [vmem:[#allocation5 + $0x228] sm:$0xff]
    %v137 = vld [vmem:[#allocation5 + $0x230] sm:$0xff]
    %v138 = vld [vmem:[#allocation5 + $0x238] sm:$0xff]
    %v139 = vld [vmem:[#allocation5 + $0x240] sm:$0xff]
    %v140 = vld [vmem:[#allocation5 + $0x248] sm:$0xff]
    %v141 = vld [vmem:[#allocation5 + $0x250] sm:$0xff]
    %v142 = vld [vmem:[#allocation5 + $0x258] sm:$0xff]
    %v143 = vld [vmem:[#allocation5 + $0x260] sm:$0xff]
    %v144 = vld [vmem:[#allocation5 + $0x268] sm:$0xff]
    %v145 = vld [vmem:[#allocation5 + $0x270] sm:$0xff]
    %v146 = vld [vmem:[#allocation5 + $0x278] sm:$0xff]
    %v147 = vld [vmem:[#allocation5 + $0x280] sm:$0xff]
    %v148 = vld [vmem:[#allocation5 + $0x288] sm:$0xff]
    %v149 = vld [vmem:[#allocation5 + $0x290] sm:$0xff]
    %v150 = vld [vmem:[#allocation5 + $0x298] sm:$0xff]
    %v151 = vld [vmem:[#allocation5 + $0x2a0] sm:$0xff]
    %v152 = vld [vmem:[#allocation5 + $0x2a8] sm:$0xff]
    %v153 = vld [vmem:[#allocation5 + $0x2b0] sm:$0xff]
    %v154 = vld [vmem:[#allocation5 + $0x2b8] sm:$0xff]
    %v155 = vld [vmem:[#allocation5 + $0x2c0] sm:$0xff]
    %v156 = vld [vmem:[#allocation5 + $0x2c8] sm:$0xff]
    %v157 = vld [vmem:[#allocation5 + $0x2d0] sm:$0xff]
    %v158 = vld [vmem:[#allocation5 + $0x2d8] sm:$0xff]
    %v159 = vld [vmem:[#allocation5 + $0x2e0] sm:$0xff]
    %v160 = vld [vmem:[#allocation5 + $0x2e8] sm:$0xff]
    %v161 = vld [vmem:[#allocation5 + $0x2f0] sm:$0xff]
    %v162 = vld [vmem:[#allocation5 + $0x2f8] sm:$0xff]
    %v163 = vld [vmem:[#allocation5 + $0x300] sm:$0xff]
    %v164 = vld [vmem:[#allocation5 + $0x308] sm:$0xff]
    %vm165 = vcmask 130048
    %v167 = vsel %vm165, %v66, 0
    %169 = vmatpush.msra.mxu0 %v82
    %170 = vmatpush.msra.mxu0 %v81
    %171 = vmatpush.msra.mxu0 %v80
    %172 = vmatpush.msra.mxu0 %v79
    %173 = vmatpush.msra.mxu0 %v78
    %174 = vmatpush.msra.mxu0 %v77
    %175 = vmatpush.msra.mxu0 %v76
    %176 = vmatpush.msra.mxu0 %v75
    %177 = vmatpush.msra.mxu0 %v74
    %178 = vmatpush.msra.mxu0 %v73
    %179 = vmatpush.msra.mxu0 %v72
    %180 = vmatpush.msra.mxu0 %v71
    %181 = vmatpush.msra.mxu0 %v70
    %182 = vmatpush.msra.mxu0 %v69
    %183 = vmatpush.msra.mxu0 %v68
    %184 = vmatpush.msra.mxu0 %v67
    %185 = vmatmul.f32.gmra.mxu0 %v60
    %v186 = vpop.f32.mrf.mxu0
    %v187 = vadd.f32 0.0, %v186
    %188 = vdwg.mxu0
    %189 = vmatpush.msra.mxu0 %v98
    %190 = vmatpush.msra.mxu0 %v97
    %191 = vmatpush.msra.mxu0 %v96
    %192 = vmatpush.msra.mxu0 %v95
    %193 = vmatpush.msra.mxu0 %v94
    %194 = vmatpush.msra.mxu0 %v93
    %195 = vmatpush.msra.mxu0 %v92
    %196 = vmatpush.msra.mxu0 %v91
    %197 = vmatpush.msra.mxu0 %v90
    %198 = vmatpush.msra.mxu0 %v89
    %199 = vmatpush.msra.mxu0 %v88
    %200 = vmatpush.msra.mxu0 %v87
    %201 = vmatpush.msra.mxu0 %v86
    %202 = vmatpush.msra.mxu0 %v85
    %203 = vmatpush.msra.mxu0 %v84
    %204 = vmatpush.msra.mxu0 %v83
    %205 = vmatmul.f32.gmra.mxu0 %v61
    %v206 = vpop.f32.mrf.mxu0
    %v207 = vadd.f32 %v187, %v206
    %208 = vdwg.mxu0
    %209 = vmatpush.msra.mxu0 %v114
    %210 = vmatpush.msra.mxu0 %v113
    %211 = vmatpush.msra.mxu0 %v112
    %212 = vmatpush.msra.mxu0 %v111
    %213 = vmatpush.msra.mxu0 %v110
    %214 = vmatpush.msra.mxu0 %v109
    %215 = vmatpush.msra.mxu0 %v108
    %216 = vmatpush.msra.mxu0 %v107
    %217 = vmatpush.msra.mxu0 %v106
    %218 = vmatpush.msra.mxu0 %v105
    %219 = vmatpush.msra.mxu0 %v104
    %220 = vmatpush.msra.mxu0 %v103
    %221 = vmatpush.msra.mxu0 %v102
    %222 = vmatpush.msra.mxu0 %v101
    %223 = vmatpush.msra.mxu0 %v100
    %224 = vmatpush.msra.mxu0 %v99
    %225 = vmatmul.f32.gmra.mxu0 %v62
    %v226 = vpop.f32.mrf.mxu0
    %v227 = vadd.f32 %v207, %v226
    %228 = vdwg.mxu0
    %229 = vmatpush.msra.mxu0 %v130
    %230 = vmatpush.msra.mxu0 %v129
    %231 = vmatpush.msra.mxu0 %v128
    %232 = vmatpush.msra.mxu0 %v127
    %233 = vmatpush.msra.mxu0 %v126
    %234 = vmatpush.msra.mxu0 %v125
    %235 = vmatpush.msra.mxu0 %v124
    %236 = vmatpush.msra.mxu0 %v123
    %237 = vmatpush.msra.mxu0 %v122
    %238 = vmatpush.msra.mxu0 %v121
    %239 = vmatpush.msra.mxu0 %v120
    %240 = vmatpush.msra.mxu0 %v119
    %241 = vmatpush.msra.mxu0 %v118
    %242 = vmatpush.msra.mxu0 %v117
    %243 = vmatpush.msra.mxu0 %v116
    %244 = vmatpush.msra.mxu0 %v115
    %245 = vmatmul.f32.gmra.mxu0 %v63
    %v246 = vpop.f32.mrf.mxu0
    %v247 = vadd.f32 %v227, %v246
    %248 = vdwg.mxu0
    %249 = vmatpush.msra.mxu0 %v146
    %250 = vmatpush.msra.mxu0 %v145
    %251 = vmatpush.msra.mxu0 %v144
    %252 = vmatpush.msra.mxu0 %v143
    %253 = vmatpush.msra.mxu0 %v142
    %254 = vmatpush.msra.mxu0 %v141
    %255 = vmatpush.msra.mxu0 %v140
    %256 = vmatpush.msra.mxu0 %v139
    %257 = vmatpush.msra.mxu0 %v138
    %258 = vmatpush.msra.mxu0 %v137
    %259 = vmatpush.msra.mxu0 %v136
    %260 = vmatpush.msra.mxu0 %v135
    %261 = vmatpush.msra.mxu0 %v134
    %262 = vmatpush.msra.mxu0 %v133
    %263 = vmatpush.msra.mxu0 %v132
    %264 = vmatpush.msra.mxu0 %v131
    %265 = vmatmul.f32.gmra.mxu0 %v64
    %v266 = vpop.f32.mrf.mxu0
    %v267 = vadd.f32 %v247, %v266
    %268 = vdwg.mxu0
    %269 = vmatpush.msra.mxu0 %v162
    %270 = vmatpush.msra.mxu0 %v161
    %271 = vmatpush.msra.mxu0 %v160
    %272 = vmatpush.msra.mxu0 %v159
    %273 = vmatpush.msra.mxu0 %v158
    %274 = vmatpush.msra.mxu0 %v157
    %275 = vmatpush.msra.mxu0 %v156
    %276 = vmatpush.msra.mxu0 %v155
    %277 = vmatpush.msra.mxu0 %v154
    %278 = vmatpush.msra.mxu0 %v153
    %279 = vmatpush.msra.mxu0 %v152
    %280 = vmatpush.msra.mxu0 %v151
    %281 = vmatpush.msra.mxu0 %v150
    %282 = vmatpush.msra.mxu0 %v149
    %283 = vmatpush.msra.mxu0 %v148
    %284 = vmatpush.msra.mxu0 %v147
    %285 = vmatmul.f32.gmra.mxu0 %v65
    %v286 = vpop.f32.mrf.mxu0
    %v287 = vadd.f32 %v267, %v286
    %288 = vdwg.mxu0
    %289 = vmatpush.msra.mxu0 0.0
    %290 = vmatpush.msra.mxu0 0.0
    %291 = vmatpush.msra.mxu0 0.0
    %292 = vmatpush.msra.mxu0 0.0
    %293 = vmatpush.msra.mxu0 0.0
    %294 = vmatpush.msra.mxu0 0.0
    %295 = vmatpush.msra.mxu0 0.0
    %296 = vmatpush.msra.mxu0 0.0
    %297 = vmatpush.msra.mxu0 0.0
    %298 = vmatpush.msra.mxu0 0.0
    %299 = vmatpush.msra.mxu0 0.0
    %300 = vmatpush.msra.mxu0 0.0
    %301 = vmatpush.msra.mxu0 0.0
    %302 = vmatpush.msra.mxu0 0.0
    %303 = vmatpush.msra.mxu0 %v164
    %304 = vmatpush.msra.mxu0 %v163
    %305 = vmatmul.f32.gmra.mxu0 %v167
    %v306 = vpop.f32.mrf.mxu0
    %v307 = vadd.f32 %v287, %v306
    %308 = vdwg.mxu0
    %v309 = vmax.f32 %v307, 0.0
    %v310 = vld [vmem:[#allocation7] sm:$0xff]
    %v311 = vld [vmem:[#allocation7 + $0x8] sm:$0xff]
    %v312 = vld [vmem:[#allocation7 + $0x10] sm:$0xff]
    %v313 = vld [vmem:[#allocation7 + $0x18] sm:$0xff]
    %v314 = vld [vmem:[#allocation7 + $0x20] sm:$0xff]
    %v315 = vld [vmem:[#allocation7 + $0x28] sm:$0xff]
    %v316 = vld [vmem:[#allocation7 + $0x30] sm:$0xff]
    %v317 = vld [vmem:[#allocation7 + $0x38] sm:$0xff]
    %v318 = vld [vmem:[#allocation7 + $0x40] sm:$0xff]
    %v319 = vld [vmem:[#allocation7 + $0x48] sm:$0xff]
    %v320 = vld [vmem:[#allocation7 + $0x50] sm:$0xff]
    %v321 = vld [vmem:[#allocation7 + $0x58] sm:$0xff]
    %v322 = vld [vmem:[#allocation7 + $0x60] sm:$0xff]
    %v323 = vld [vmem:[#allocation7 + $0x68] sm:$0xff]
    %v324 = vld [vmem:[#allocation7 + $0x70] sm:$0xff]
    %v325 = vld [vmem:[#allocation7 + $0x78] sm:$0xff]
    %326 = vmatpush.msra.mxu0 %v325
    %327 = vmatpush.msra.mxu0 %v324
    %328 = vmatpush.msra.mxu0 %v323
    %329 = vmatpush.msra.mxu0 %v322
    %330 = vmatpush.msra.mxu0 %v321
    %331 = vmatpush.msra.mxu0 %v320
    %332 = vmatpush.msra.mxu0 %v319
    %333 = vmatpush.msra.mxu0 %v318
    %334 = vmatpush.msra.mxu0 %v317
    %335 = vmatpush.msra.mxu0 %v316
    %336 = vmatpush.msra.mxu0 %v315
    %337 = vmatpush.msra.mxu0 %v314
    %338 = vmatpush.msra.mxu0 %v313
    %339 = vmatpush.msra.mxu0 %v312
    %340 = vmatpush.msra.mxu0 %v311
    %341 = vmatpush.msra.mxu0 %v310
    %342 = vmatmul.f32.gmra.mxu0 %v309
    %v343 = vpop.f32.mrf.mxu0
    %v344 = vadd.f32 0.0, %v343
    %345 = vdwg.mxu0
    %346 = vst [vmem:[#allocation8] sm:$0xff] %v344
    // Predicated region
    $region26: #{tpu_custom_call.1} parent=1 // pred_check
      _
    $region27: #{tpu_custom_call.1} parent=1 // pred_check_branch
      %348 = sbr.rel (0) target = $region29
    $region28: #{tpu_custom_call.1} parent=1 // pred_region
      %350 = vsyncadd [#allocation4], 0
      %s352 = sshll.u32 [#allocation8], 4
      %s353 = int_to_ptr.vmem [resolvable:$true] %s352
      %s354 = sshll.u32 %s3, 4
      %s355 = int_to_ptr.hbm [resolvable:$true] %s354
      %357 = dma.vmem_to_hbm [thread:$0]  %s353, 128, %s355, [#allocation4]
    $region29: #{tpu_custom_call.1} parent=1 // pred_fallthru
      _
    // Predicated region
    $region30: #{tpu_custom_call.1} parent=1 // pred_check
      _
    $region31: #{tpu_custom_call.1} parent=1 // pred_check_branch
      %359 = sbr.rel (0) target = $region33
    $region32: #{tpu_custom_call.1} parent=1 // pred_region
      %361 = dma.done [#allocation4], 128
    $region33: #{tpu_custom_call.1} parent=1 // pred_fallthru
      _
    %362 = vsyncpa [#allocation3], 1
    %363 = vsyncpa [#allocation6], 1
    %364 = vsyncpa [#allocation4], 1

</llo_original>
